<compile_context>
chip_gen: v6e
topology: v6e:2x2x1
jax: 0.10.0
libtpu: 0.0.40
codegen_flags: <defaults>
</compile_context>

<pallas_src>
import functools

import jax
import jax.numpy as jnp
from jax.experimental import pallas as pl
from jax.experimental.pallas import tpu as pltpu

LANE_ALIGN = 128   # vreg lane width


def _round_up(x, m):
    return ((x + m - 1) // m) * m


# ----------------------------------------------------------------------------
# Pallas kernel: one fused call, two MXU matmuls (molecule rows / KG rows), f32
# accumulate, f32 bias add, lane-dense unmasked stores.  All operands are tiny
# (largest is the ~160 KiB bf16 molecule weight slab) so whole-array VMEM blocks
# are used — no grid bookkeeping, no HBM round-trips for intermediates.
# ----------------------------------------------------------------------------
def _fused_dual_linear_kernel(xm_ref, xk_ref, wm_ref, bm_ref, wk_ref, bk_ref,
                              om_ref, ok_ref):
    # Cast activations to bf16 inside the kernel (native MXU dtype); accumulate in f32.
    xm = xm_ref[...].astype(jnp.bfloat16)
    xk = xk_ref[...].astype(jnp.bfloat16)
    acc_m = jnp.dot(xm, wm_ref[...], preferred_element_type=jnp.float32)
    acc_k = jnp.dot(xk, wk_ref[...], preferred_element_type=jnp.float32)
    om_ref[...] = acc_m + bm_ref[...]
    ok_ref[...] = acc_k + bk_ref[...]


def fused_dual_linear(xm, xk, wm, bm, wk, bk):
    """(xm @ wm + bm, xk @ wk + bk) in one pallas_call; weights bf16, acc f32."""
    Rm, Km = xm.shape
    Rk, Kk = xk.shape
    Km2, Nm = wm.shape
    Kk2, Nk = wk.shape
    assert Km == Km2 and Kk == Kk2
    assert bm.shape == (1, Nm) and bk.shape == (1, Nk)
    assert Nm % LANE_ALIGN == 0 and Nk % LANE_ALIGN == 0

    cost = pl.CostEstimate(
        flops=2 * (Rm * Km * Nm + Rk * Kk * Nk),
        transcendentals=0,
        bytes_accessed=(4 * (Rm * Km + Rk * Kk)          # f32 activations in
                        + 2 * (Km * Nm + Kk * Nk)        # bf16 weights in
                        + 4 * (Nm + Nk)                  # f32 biases in
                        + 4 * (Rm * Nm + Rk * Nk)),      # f32 outputs
    )
    vmem_spec = pl.BlockSpec(memory_space=pltpu.MemorySpace.VMEM)
    return pl.pallas_call(
        _fused_dual_linear_kernel,
        out_shape=(jax.ShapeDtypeStruct((Rm, Nm), jnp.float32),
                   jax.ShapeDtypeStruct((Rk, Nk), jnp.float32)),
        in_specs=[vmem_spec] * 6,
        out_specs=(vmem_spec, vmem_spec),
        cost_estimate=cost,
    )(xm, xk, wm, bm, wk, bk)


# ----------------------------------------------------------------------------
# Deterministic parameter construction (same PRNG layout as previous version)
# ----------------------------------------------------------------------------
def make_params(hidden_emb=32, m_feat=64, node_emb_dim=64, node_vocab=16,
                rel_vocab=8, dtype=jnp.float32):
    keys = jax.random.split(jax.random.PRNGKey(42), 12)

    def lin(kw, kb, fan_in, fan_out):
        bound = 1.0 / jnp.sqrt(fan_in)
        w = jax.random.uniform(kw, (fan_in, fan_out), dtype, -bound, bound)
        b = jax.random.uniform(kb, (fan_out,), dtype, -bound, bound)
        return w, b

    params = {}
    # stand-in MGNN: two linear heads m_feat -> 1200 (bond-level / atom-level emb)
    params["mgnn_wb"], params["mgnn_bb"] = lin(keys[0], keys[1], m_feat, 1200)
    params["mgnn_wa"], params["mgnn_ba"] = lin(keys[2], keys[3], m_feat, 1200)
    # stand-in KGNN: node / relation embedding tables + linear node_emb_dim -> 200
    params["kgnn_node_table"] = 0.1 * jax.random.normal(keys[4], (node_vocab, node_emb_dim), dtype)
    params["kgnn_rel_table"] = 0.1 * jax.random.normal(keys[5], (rel_vocab, node_emb_dim), dtype)
    params["kgnn_w"], params["kgnn_b"] = lin(keys[6], keys[7], node_emb_dim, 200)
    # projectors defined by ContrastiveLearning itself
    params["proj1_w"], params["proj1_b"] = lin(keys[8], keys[9], 1200, hidden_emb)
    params["proj2_w"], params["proj2_b"] = lin(keys[10], keys[11], 200, hidden_emb)
    return params


# ----------------------------------------------------------------------------
# Pack weights once: projector fold in f32, lane-dense padding, then bf16 cast.
#   (x W + b) P + p == x (W P) + (b P + p)  — exact fold since the wide intermediate
#   is never returned.  Only the bond head (returned unprojected) keeps its full width.
# ----------------------------------------------------------------------------
def pack_params(params, use_projector=True):
    m_feat = params["mgnn_wb"].shape[0]
    node_dim = params["kgnn_w"].shape[0]
    n_bond = params["mgnn_wb"].shape[1]          # 1200, returned unprojected

    if use_projector:
        w_a = params["mgnn_wa"] @ params["proj1_w"]                        # (m_feat, H)
        b_a = params["mgnn_ba"] @ params["proj1_w"] + params["proj1_b"]    # (H,)
        w_k = params["kgnn_w"] @ params["proj2_w"]                         # (node_dim, H)
        b_k = params["kgnn_b"] @ params["proj2_w"] + params["proj2_b"]     # (H,)
    else:
        w_a, b_a = params["mgnn_wa"], params["mgnn_ba"]
        w_k, b_k = params["kgnn_w"], params["kgnn_b"]

    width_a = w_a.shape[1]
    width_k = w_k.shape[1]
    n_m_pad = _round_up(n_bond + width_a, LANE_ALIGN)   # molecule-row output slab
    n_k_pad = _round_up(width_k, LANE_ALIGN)            # KG-row output slab

    # molecule weight slab: [ bond head || (folded) atom head || zero pad ]
    w_m = jnp.zeros((m_feat, n_m_pad), jnp.float32)
    w_m = w_m.at[:, :n_bond].set(params["mgnn_wb"])
    w_m = w_m.at[:, n_bond:n_bond + width_a].set(w_a)
    b_m = jnp.zeros((1, n_m_pad), jnp.float32)
    b_m = b_m.at[0, :n_bond].set(params["mgnn_bb"])
    b_m = b_m.at[0, n_bond:n_bond + width_a].set(b_a)

    # KG weight slab: [ (folded) node head || zero pad ]
    w_kg = jnp.zeros((node_dim, n_k_pad), jnp.float32)
    w_kg = w_kg.at[:, :width_k].set(w_k)
    b_kg = jnp.zeros((1, n_k_pad), jnp.float32)
    b_kg = b_kg.at[0, :width_k].set(b_k)

    packed = {
        # bf16 weights (fold already done in f32); biases stay f32.
        "w_m": w_m.astype(jnp.bfloat16),
        "b_m": b_m,
        "w_k": w_kg.astype(jnp.bfloat16),
        "b_k": b_kg,
        "node_table": params["kgnn_node_table"],
        "rel_table": params["kgnn_rel_table"],
    }
    layout = (n_bond, width_a, width_k)          # static python ints
    return packed, layout


# ----------------------------------------------------------------------------
# ContrastiveLearning.forward — single jitted function, single Pallas call
# ----------------------------------------------------------------------------
@functools.partial(jax.jit, static_argnames=("layout",))
def contrastive_learning_forward(packed, m_batch, k_batch, *, layout):
    n_bond, width_a, width_k = layout

    # --- KGNN stand-in glue (gather + segment_sum; data-dependent, stays in JAX) ---
    # TODO(synk): real KGNN message passing is unspecified in the reference module;
    # this is a one-hop relational aggregation stand-in.  At realistic edge counts
    # consider a one-hot (E x N) @ rel_h matmul riding the MXU instead.
    node_h = jnp.take(packed["node_table"], k_batch["masked_node_ids"], axis=0)
    rel_h = jnp.take(packed["rel_table"], k_batch["relation"], axis=0)
    dst = k_batch["edge_index"][1]
    n_nodes = node_h.shape[0]
    node_h = node_h + jax.ops.segment_sum(rel_h, dst, num_segments=n_nodes)

    # --- single fused Pallas call: two matmuls, no HBM-staged input slab -----------
    out_m, out_k = fused_dual_linear(
        m_batch.astype(jnp.float32), node_h.astype(jnp.float32),
        packed["w_m"], packed["b_m"], packed["w_k"], packed["b_k"])

    B = m_batch.shape[0]
    m_b_emd = out_m[:B, :n_bond]
    m_a_emb = out_m[:B, n_bond:n_bond + width_a]
    k_node_emb = out_k[:n_nodes, :width_k]

    # NOTE: the reference's `m_b_emb = self.projector_1(m_b_emb)` reads an undefined
    # name (typo for m_b_emd) and its result is never consumed; k_graph_emb is never
    # returned either.  Both are dead work (XLA would DCE them) and are not built here.
    return m_b_emd, m_a_emb, k_node_emb


# ----------------------------------------------------------------------------
if __name__ == "__main__":
    B = 4            # molecules in m_batch
    M_FEAT = 64      # molecule feature dim fed to the mgnn stand-in
    N_NODES = 8      # KG nodes
    N_EDGES = 12
    HIDDEN = 32      # hidden_emb

    params = make_params(hidden_emb=HIDDEN, m_feat=M_FEAT)
    packed, layout = pack_params(params, use_projector=True)

    key = jax.random.PRNGKey(0)
    k0, k1, k2, k3 = jax.random.split(key, 4)
    m_batch = jax.random.normal(k0, (B, M_FEAT), jnp.float32)
    k_batch = {
        "masked_node_ids": jax.random.randint(k1, (N_NODES,), 0, 16),
        "relation": jax.random.randint(k2, (N_EDGES,), 0, 8),
        "center_molecule_id": jnp.int32(0),
        "non_molecule_node_ids": jnp.arange(4, dtype=jnp.int32),
        "edge_index": jax.random.randint(k3, (2, N_EDGES), 0, N_NODES),
    }

    m_b_emd, m_a_emb, k_node_emb = jax.block_until_ready(
        contrastive_learning_forward(packed, m_batch, k_batch, layout=layout)
    )

    assert m_b_emd.shape == (B, 1200)
    assert m_a_emb.shape == (B, HIDDEN)
    assert k_node_emb.shape == (N_NODES, HIDDEN)

    # plain-JAX f32 reference (unfolded weights) for all three returned tensors
    ref_m_b = m_batch @ params["mgnn_wb"] + params["mgnn_bb"]
    ref_m_a = (m_batch @ params["mgnn_wa"] + params["mgnn_ba"]) @ params["proj1_w"] + params["proj1_b"]
    node_h_ref = jnp.take(params["kgnn_node_table"], k_batch["masked_node_ids"], axis=0)
    rel_h_ref = jnp.take(params["kgnn_rel_table"], k_batch["relation"], axis=0)
    node_h_ref = node_h_ref + jnp.zeros_like(node_h_ref).at[k_batch["edge_index"][1]].add(rel_h_ref)
    ref_k = (node_h_ref @ params["kgnn_w"] + params["kgnn_b"]) @ params["proj2_w"] + params["proj2_b"]

    # bf16 weights / activations, f32 accumulate → slightly looser tolerance than pure f32
    TOL = dict(atol=3e-2, rtol=3e-2)
    assert jnp.allclose(m_b_emd, ref_m_b, **TOL)
    assert jnp.allclose(m_a_emb, ref_m_a, **TOL)
    assert jnp.allclose(k_node_emb, ref_k, **TOL)

    # also exercise the use_projector=False packing (module default)
    packed_np, layout_np = pack_params(params, use_projector=False)
    m_b2, m_a2, k_n2 = jax.block_until_ready(
        contrastive_learning_forward(packed_np, m_batch, k_batch, layout=layout_np)
    )
    assert m_b2.shape == (B, 1200) and m_a2.shape == (B, 1200) and k_n2.shape == (N_NODES, 200)
    assert jnp.allclose(m_b2, ref_m_b, **TOL)
    assert jnp.allclose(m_a2, m_batch @ params["mgnn_wa"] + params["mgnn_ba"], **TOL)
    assert jnp.allclose(k_n2, node_h_ref @ params["kgnn_w"] + params["kgnn_b"], **TOL)

    print("KERNEL_OK")
</pallas_src>

<mosaic_0001>
module attributes {stable_mosaic.version = 11 : i64} {
  func.func @_fused_dual_linear_kernel(%arg0: memref<4x64xf32, #tpu.memory_space<vmem>>, %arg1: memref<8x64xf32, #tpu.memory_space<vmem>>, %arg2: memref<64x1280xbf16, #tpu.memory_space<vmem>>, %arg3: memref<1x1280xf32, #tpu.memory_space<vmem>>, %arg4: memref<64x128xbf16, #tpu.memory_space<vmem>>, %arg5: memref<1x128xf32, #tpu.memory_space<vmem>>, %arg6: memref<4x1280xf32, #tpu.memory_space<vmem>>, %arg7: memref<8x128xf32, #tpu.memory_space<vmem>>) attributes {dimension_semantics = [], scalar_prefetch = 0 : i64, scratch_operands = 0 : i64, tpu.core_type = #tpu.core_type<tc>} {
    %c0 = arith.constant 0 : index
    %c0_0 = arith.constant 0 : index
    %0 = vector.load %arg0[%c0, %c0_0] : memref<4x64xf32, #tpu.memory_space<vmem>>, vector<4x64xf32>
    %1 = arith.truncf %0 : vector<4x64xf32> to vector<4x64xbf16>
    %c0_1 = arith.constant 0 : index
    %c0_2 = arith.constant 0 : index
    %2 = vector.load %arg1[%c0_1, %c0_2] : memref<8x64xf32, #tpu.memory_space<vmem>>, vector<8x64xf32>
    %3 = arith.truncf %2 : vector<8x64xf32> to vector<8x64xbf16>
    %c0_3 = arith.constant 0 : index
    %c0_4 = arith.constant 0 : index
    %4 = vector.load %arg2[%c0_3, %c0_4] : memref<64x1280xbf16, #tpu.memory_space<vmem>>, vector<64x1280xbf16>
    %cst = arith.constant dense<0.000000e+00> : vector<4x1280xf32>
    %5 = tpu.matmul %1, %4, %cst {dimension_numbers = #tpu.dot_dimension_numbers<[1], [0], [0], [1], [0, 0, 1, 1], [], []>} : vector<4x64xbf16>, vector<64x1280xbf16>, vector<4x1280xf32> -> vector<4x1280xf32>
    %c0_5 = arith.constant 0 : index
    %c0_6 = arith.constant 0 : index
    %6 = vector.load %arg4[%c0_5, %c0_6] : memref<64x128xbf16, #tpu.memory_space<vmem>>, vector<64x128xbf16>
    %cst_7 = arith.constant dense<0.000000e+00> : vector<8x128xf32>
    %7 = tpu.matmul %3, %6, %cst_7 {dimension_numbers = #tpu.dot_dimension_numbers<[1], [0], [0], [1], [0, 0, 1, 1], [], []>} : vector<8x64xbf16>, vector<64x128xbf16>, vector<8x128xf32> -> vector<8x128xf32>
    %c0_8 = arith.constant 0 : index
    %c0_9 = arith.constant 0 : index
    %8 = vector.load %arg3[%c0_8, %c0_9] : memref<1x1280xf32, #tpu.memory_space<vmem>>, vector<1x1280xf32>
    %9 = vector.broadcast %8 : vector<1x1280xf32> to vector<4x1280xf32>
    %10 = arith.addf %5, %9 : vector<4x1280xf32>
    %c0_10 = arith.constant 0 : index
    %c0_11 = arith.constant 0 : index
    %11 = vector.load %arg6[%c0_10, %c0_11] : memref<4x1280xf32, #tpu.memory_space<vmem>>, vector<4x1280xf32>
    tpu.vector_store %arg6[%c0_10, %c0_11], %10 {strides = array<i32>} : memref<4x1280xf32, #tpu.memory_space<vmem>>, vector<4x1280xf32>,
    %c0_12 = arith.constant 0 : index
    %c0_13 = arith.constant 0 : index
    %12 = vector.load %arg5[%c0_12, %c0_13] : memref<1x128xf32, #tpu.memory_space<vmem>>, vector<1x128xf32>
    %13 = vector.broadcast %12 : vector<1x128xf32> to vector<8x128xf32>
    %14 = arith.addf %7, %13 : vector<8x128xf32>
    %c0_14 = arith.constant 0 : index
    %c0_15 = arith.constant 0 : index
    %15 = vector.load %arg7[%c0_14, %c0_15] : memref<8x128xf32, #tpu.memory_space<vmem>>, vector<8x128xf32>
    tpu.vector_store %arg7[%c0_14, %c0_15], %14 {strides = array<i32>} : memref<8x128xf32, #tpu.memory_space<vmem>>, vector<8x128xf32>,
    return
  }
}

</mosaic_0001>

<llo_original>
// kernel: contrastive_learning_forward.1
$region0: #{contrastive_learning_forward.1}
  #allocation0 [shape = 'u32[]', space=smem, size = 0x4, offset = 0x4, fixed_abs, tag = 'smem constant byte address 0x4 - core index']
  #allocation1 [shape = 'u32[144,128]{1,0:T(1,128)}', space=vmem, size = 0x12000, scoped, tag = 'internal scratch']
  %s0 = inlined_call_operand.vmem [shape: f32[4,64], index: 0, kind: input, shape index: {}]
  %s1 = inlined_call_operand.vmem [shape: f32[8,64], index: 1, kind: input, shape index: {}]
  %s2 = inlined_call_operand.hbm [shape: bf16[64,1280], index: 2, kind: input, shape index: {}]
  %s3 = inlined_call_operand.vmem [shape: f32[1,1280], index: 3, kind: input, shape index: {}]
  %s4 = inlined_call_operand.vmem [shape: bf16[64,128], index: 4, kind: input, shape index: {}]
  %s5 = inlined_call_operand.vmem [shape: f32[1,128], index: 5, kind: input, shape index: {}]
  %s6 = inlined_call_operand.vmem [shape: f32[4,1280], index: 6, kind: output, shape index: {0}]
  %s7 = inlined_call_operand.hbm [shape: f32[8,128], index: 7, kind: output, shape index: {1}]
  %8 = xla_tuple %s6, %s7
  %s9 = sld [smem:[#allocation0]]
  $region46: #{contrastive_learning_forward.1} parent=0
    _
  %s11 = ssub.s32 1, %s9
  %s12 = scalar_select 0, %s11, %s9
  $region1: #{contrastive_learning_forward.1} parent=0
    #allocation2 [shape = 'u8[163840]{0}', space=vmem, size = 0x28000, scoped, tag = 'input window, operand 2, single buffered']
    #allocation3 [shape = 's32[1]{0}', space=sflag, size = 0x4, scoped, tag = 'scoped memory for contrastive_learning_forward.1']
    #allocation4 [shape = 's32[1]{0}', space=sflag, size = 0x4, scoped, tag = 'scoped memory for contrastive_learning_forward.1']
    #allocation5 [shape = 'u8[4096]{0}', space=vmem, size = 0x1000, scoped, tag = 'output window, operand 1, single buffered']
    %13 = vsyncpa [#allocation3], 0
    %14 = vsyncpa [#allocation4], 0
    // Predicated region
    $region2: #{contrastive_learning_forward.1} parent=1 // pred_check
      _
    $region3: #{contrastive_learning_forward.1} parent=1 // pred_check_branch
      %16 = sbr.rel (0) target = $region5
    $region4: #{contrastive_learning_forward.1} parent=1 // pred_region
      _
    $region5: #{contrastive_learning_forward.1} parent=1 // pred_fallthru
      _
    // Predicated region
    $region6: #{contrastive_learning_forward.1} parent=1 // pred_check
      _
    $region7: #{contrastive_learning_forward.1} parent=1 // pred_check_branch
      %18 = sbr.rel (0) target = $region9
    $region8: #{contrastive_learning_forward.1} parent=1 // pred_region
      _
    $region9: #{contrastive_learning_forward.1} parent=1 // pred_fallthru
      _
    // Predicated region
    $region10: #{contrastive_learning_forward.1} parent=1 // pred_check
      _
    $region11: #{contrastive_learning_forward.1} parent=1 // pred_check_branch
      %20 = sbr.rel (0) target = $region13
    $region12: #{contrastive_learning_forward.1} parent=1 // pred_region
      %s22 = ssub.s32 5120, 5120
      %23 = vsyncadd [#allocation3], %s22
      %s24 = sshll.u32 [#allocation2], 4
      %s25 = int_to_ptr.vmem [resolvable:$true] %s24
      %30 = dma.hbm_to_vmem [thread:$0]  %s2, 5120, %s25, [#allocation3], 640, 640, 40
    $region13: #{contrastive_learning_forward.1} parent=1 // pred_fallthru
      _
    // Predicated region
    $region14: #{contrastive_learning_forward.1} parent=1 // pred_check
      _
    $region15: #{contrastive_learning_forward.1} parent=1 // pred_check_branch
      %32 = sbr.rel (0) target = $region17
    $region16: #{contrastive_learning_forward.1} parent=1 // pred_region
      _
    $region17: #{contrastive_learning_forward.1} parent=1 // pred_fallthru
      _
    // Predicated region
    $region18: #{contrastive_learning_forward.1} parent=1 // pred_check
      _
    $region19: #{contrastive_learning_forward.1} parent=1 // pred_check_branch
      %34 = sbr.rel (0) target = $region21
    $region20: #{contrastive_learning_forward.1} parent=1 // pred_region
      _
    $region21: #{contrastive_learning_forward.1} parent=1 // pred_fallthru
      _
    // Predicated region
    $region22: #{contrastive_learning_forward.1} parent=1 // pred_check
      _
    $region23: #{contrastive_learning_forward.1} parent=1 // pred_check_branch
      %36 = sbr.rel (0) target = $region25
    $region24: #{contrastive_learning_forward.1} parent=1 // pred_region
      _
    $region25: #{contrastive_learning_forward.1} parent=1 // pred_fallthru
      _
    // Predicated region
    $region26: #{contrastive_learning_forward.1} parent=1 // pred_check
      _
    $region27: #{contrastive_learning_forward.1} parent=1 // pred_check_branch
      %38 = sbr.rel (0) target = $region29
    $region28: #{contrastive_learning_forward.1} parent=1 // pred_region
      %39 = dma.done [#allocation3], 5120
    $region29: #{contrastive_learning_forward.1} parent=1 // pred_fallthru
      _
    %v41 = vld [vmem:[%s0] sm:$0xf]
    %v42 = vpack.c.bf16 %v41, %v41
    %v43 = vld [vmem:[%s1] sm:$0xff]
    %v44 = vpack.c.bf16 %v43, %v43
    %v45 = vld [vmem:[#allocation2] sm:$0xff]
    %v46 = vld [vmem:[#allocation2 + $0x8] sm:$0xff]
    %v47 = vld [vmem:[#allocation2 + $0x10] sm:$0xff]
    %v48 = vld [vmem:[#allocation2 + $0x18] sm:$0xff]
    %v49 = vld [vmem:[#allocation2 + $0x20] sm:$0xff]
    %v50 = vld [vmem:[#allocation2 + $0x28] sm:$0xff]
    %v51 = vld [vmem:[#allocation2 + $0x30] sm:$0xff]
    %v52 = vld [vmem:[#allocation2 + $0x38] sm:$0xff]
    %v53 = vld [vmem:[#allocation2 + $0x40] sm:$0xff]
    %v54 = vld [vmem:[#allocation2 + $0x48] sm:$0xff]
    %v55 = vld [vmem:[#allocation2 + $0x50] sm:$0xff]
    %v56 = vld [vmem:[#allocation2 + $0x58] sm:$0xff]
    %v57 = vld [vmem:[#allocation2 + $0x60] sm:$0xff]
    %v58 = vld [vmem:[#allocation2 + $0x68] sm:$0xff]
    %v59 = vld [vmem:[#allocation2 + $0x70] sm:$0xff]
    %v60 = vld [vmem:[#allocation2 + $0x78] sm:$0xff]
    %v61 = vld [vmem:[#allocation2 + $0x80] sm:$0xff]
    %v62 = vld [vmem:[#allocation2 + $0x88] sm:$0xff]
    %v63 = vld [vmem:[#allocation2 + $0x90] sm:$0xff]
    %v64 = vld [vmem:[#allocation2 + $0x98] sm:$0xff]
    %v65 = vld [vmem:[#allocation2 + $0xa0] sm:$0xff]
    %v66 = vld [vmem:[#allocation2 + $0xa8] sm:$0xff]
    %v67 = vld [vmem:[#allocation2 + $0xb0] sm:$0xff]
    %v68 = vld [vmem:[#allocation2 + $0xb8] sm:$0xff]
    %v69 = vld [vmem:[#allocation2 + $0xc0] sm:$0xff]
    %v70 = vld [vmem:[#allocation2 + $0xc8] sm:$0xff]
    %v71 = vld [vmem:[#allocation2 + $0xd0] sm:$0xff]
    %v72 = vld [vmem:[#allocation2 + $0xd8] sm:$0xff]
    %v73 = vld [vmem:[#allocation2 + $0xe0] sm:$0xff]
    %v74 = vld [vmem:[#allocation2 + $0xe8] sm:$0xff]
    %v75 = vld [vmem:[#allocation2 + $0xf0] sm:$0xff]
    %v76 = vld [vmem:[#allocation2 + $0xf8] sm:$0xff]
    %v77 = vld [vmem:[#allocation2 + $0x100] sm:$0xff]
    %v78 = vld [vmem:[#allocation2 + $0x108] sm:$0xff]
    %v79 = vld [vmem:[#allocation2 + $0x110] sm:$0xff]
    %v80 = vld [vmem:[#allocation2 + $0x118] sm:$0xff]
    %v81 = vld [vmem:[#allocation2 + $0x120] sm:$0xff]
    %v82 = vld [vmem:[#allocation2 + $0x128] sm:$0xff]
    %v83 = vld [vmem:[#allocation2 + $0x130] sm:$0xff]
    %v84 = vld [vmem:[#allocation2 + $0x138] sm:$0xff]
    %v85 = vld [vmem:[%s4] sm:$0xf]
    %v86 = vld [vmem:[%s4 + $0x4] sm:$0xf]
    %v87 = vld [vmem:[%s4 + $0x8] sm:$0xf]
    %v88 = vld [vmem:[%s4 + $0xc] sm:$0xf]
    %v89 = vld [vmem:[%s4 + $0x10] sm:$0xf]
    %v90 = vld [vmem:[%s4 + $0x14] sm:$0xf]
    %v91 = vld [vmem:[%s4 + $0x18] sm:$0xf]
    %v92 = vld [vmem:[%s4 + $0x1c] sm:$0xf]
    %v93 = vld [vmem:[%s3] sm:$0xff]
    %v94 = vld [vmem:[%s3 + $0x8] sm:$0x3]
    %v97 = vlaneseq
    %v98 = vshrl.u32 %v97, 7
    %v99 = vsub.s32 0, %v98
    %v100 = vrot.slane %v93, %v99
    %v101 = vlaneseq
    %v102 = vshrl.u32 %v101, 7
    %v103 = vsub.s32 1, %v102
    %v104 = vrot.slane %v93, %v103
    %v105 = vlaneseq
    %v106 = vshrl.u32 %v105, 7
    %v107 = vsub.s32 2, %v106
    %v108 = vrot.slane %v93, %v107
    %v109 = vlaneseq
    %v110 = vshrl.u32 %v109, 7
    %v111 = vsub.s32 3, %v110
    %v112 = vrot.slane %v93, %v111
    %v113 = vlaneseq
    %v114 = vshrl.u32 %v113, 7
    %v115 = vsub.s32 4, %v114
    %v116 = vrot.slane %v93, %v115
    %v117 = vlaneseq
    %v118 = vshrl.u32 %v117, 7
    %v119 = vsub.s32 5, %v118
    %v120 = vrot.slane %v93, %v119
    %v121 = vlaneseq
    %v122 = vshrl.u32 %v121, 7
    %v123 = vsub.s32 6, %v122
    %v124 = vrot.slane %v93, %v123
    %v125 = vlaneseq
    %v126 = vshrl.u32 %v125, 7
    %v127 = vsub.s32 7, %v126
    %v128 = vrot.slane %v93, %v127
    %v129 = vlaneseq
    %v130 = vshrl.u32 %v129, 7
    %v131 = vsub.s32 0, %v130
    %v132 = vrot.slane %v94, %v131
    %v133 = vlaneseq
    %v134 = vshrl.u32 %v133, 7
    %v135 = vsub.s32 1, %v134
    %v136 = vrot.slane %v94, %v135
    %v187 = vunpack.c.l.b16 %v45
    %v188 = vunpack.c.h.b16 %v45
    %v189 = vunpack.c.l.b16 %v46
    %v190 = vunpack.c.h.b16 %v46
    %v191 = vunpack.c.l.b16 %v47
    %v192 = vunpack.c.h.b16 %v47
    %v193 = vunpack.c.l.b16 %v48
    %v194 = vunpack.c.h.b16 %v48
    %v195 = vunpack.c.l.b16 %v49
    %v196 = vunpack.c.h.b16 %v49
    %v197 = vunpack.c.l.b16 %v50
    %v198 = vunpack.c.h.b16 %v50
    %v199 = vunpack.c.l.b16 %v51
    %v200 = vunpack.c.h.b16 %v51
    %v201 = vunpack.c.l.b16 %v52
    %v202 = vunpack.c.h.b16 %v52
    %v203 = vunpack.c.l.b16 %v53
    %v204 = vunpack.c.h.b16 %v53
    %v205 = vunpack.c.l.b16 %v54
    %v206 = vunpack.c.h.b16 %v54
    %v207 = vunpack.c.l.b16 %v55
    %v208 = vunpack.c.h.b16 %v55
    %v209 = vunpack.c.l.b16 %v56
    %v210 = vunpack.c.h.b16 %v56
    %v211 = vunpack.c.l.b16 %v57
    %v212 = vunpack.c.h.b16 %v57
    %v213 = vunpack.c.l.b16 %v58
    %v214 = vunpack.c.h.b16 %v58
    %v215 = vunpack.c.l.b16 %v59
    %v216 = vunpack.c.h.b16 %v59
    %v217 = vunpack.c.l.b16 %v60
    %v218 = vunpack.c.h.b16 %v60
    %v219 = vunpack.c.l.b16 %v61
    %v220 = vunpack.c.h.b16 %v61
    %v221 = vunpack.c.l.b16 %v62
    %v222 = vunpack.c.h.b16 %v62
    %v223 = vunpack.c.l.b16 %v63
    %v224 = vunpack.c.h.b16 %v63
    %v225 = vunpack.c.l.b16 %v64
    %v226 = vunpack.c.h.b16 %v64
    %v227 = vunpack.c.l.b16 %v65
    %v228 = vunpack.c.h.b16 %v65
    %v229 = vunpack.c.l.b16 %v66
    %v230 = vunpack.c.h.b16 %v66
    %v231 = vunpack.c.l.b16 %v67
    %v232 = vunpack.c.h.b16 %v67
    %v233 = vunpack.c.l.b16 %v68
    %v234 = vunpack.c.h.b16 %v68
    %v235 = vunpack.c.l.b16 %v69
    %v236 = vunpack.c.h.b16 %v69
    %v237 = vunpack.c.l.b16 %v70
    %v238 = vunpack.c.h.b16 %v70
    %v239 = vunpack.c.l.b16 %v71
    %v240 = vunpack.c.h.b16 %v71
    %v241 = vunpack.c.l.b16 %v72
    %v242 = vunpack.c.h.b16 %v72
    %v243 = vunpack.c.l.b16 %v73
    %v244 = vunpack.c.h.b16 %v73
    %v245 = vunpack.c.l.b16 %v74
    %v246 = vunpack.c.h.b16 %v74
    %v247 = vunpack.c.l.b16 %v75
    %v248 = vunpack.c.h.b16 %v75
    %v249 = vunpack.c.l.b16 %v76
    %v250 = vunpack.c.h.b16 %v76
    %v251 = vunpack.c.l.b16 %v77
    %v252 = vunpack.c.h.b16 %v77
    %v253 = vunpack.c.l.b16 %v78
    %v254 = vunpack.c.h.b16 %v78
    %v255 = vunpack.c.l.b16 %v79
    %v256 = vunpack.c.h.b16 %v79
    %v257 = vunpack.c.l.b16 %v80
    %v258 = vunpack.c.h.b16 %v80
    %v259 = vunpack.c.l.b16 %v81
    %v260 = vunpack.c.h.b16 %v81
    %v261 = vunpack.c.l.b16 %v82
    %v262 = vunpack.c.h.b16 %v82
    %v263 = vunpack.c.l.b16 %v83
    %v264 = vunpack.c.h.b16 %v83
    %v265 = vunpack.c.l.b16 %v84
    %v266 = vunpack.c.h.b16 %v84
    %v267 = vpack.c.b16 %v197, %v187
    %v268 = vpack.c.b16 %v198, %v188
    %v269 = vpack.c.b16 %v199, %v189
    %v270 = vpack.c.b16 %v200, %v190
    %v271 = vpack.c.b16 %v201, %v191
    %v272 = vpack.c.b16 %v202, %v192
    %v273 = vpack.c.b16 %v203, %v193
    %v274 = vpack.c.b16 %v204, %v194
    %v275 = vpack.c.b16 %v205, %v195
    %v276 = vpack.c.b16 %v206, %v196
    %v277 = vpack.c.b16 %v217, %v207
    %v278 = vpack.c.b16 %v218, %v208
    %v279 = vpack.c.b16 %v219, %v209
    %v280 = vpack.c.b16 %v220, %v210
    %v281 = vpack.c.b16 %v221, %v211
    %v282 = vpack.c.b16 %v222, %v212
    %v283 = vpack.c.b16 %v223, %v213
    %v284 = vpack.c.b16 %v224, %v214
    %v285 = vpack.c.b16 %v225, %v215
    %v286 = vpack.c.b16 %v226, %v216
    %v287 = vpack.c.b16 %v237, %v227
    %v288 = vpack.c.b16 %v238, %v228
    %v289 = vpack.c.b16 %v239, %v229
    %v290 = vpack.c.b16 %v240, %v230
    %v291 = vpack.c.b16 %v241, %v231
    %v292 = vpack.c.b16 %v242, %v232
    %v293 = vpack.c.b16 %v243, %v233
    %v294 = vpack.c.b16 %v244, %v234
    %v295 = vpack.c.b16 %v245, %v235
    %v296 = vpack.c.b16 %v246, %v236
    %v297 = vpack.c.b16 %v257, %v247
    %v298 = vpack.c.b16 %v258, %v248
    %v299 = vpack.c.b16 %v259, %v249
    %v300 = vpack.c.b16 %v260, %v250
    %v301 = vpack.c.b16 %v261, %v251
    %v302 = vpack.c.b16 %v262, %v252
    %v303 = vpack.c.b16 %v263, %v253
    %v304 = vpack.c.b16 %v264, %v254
    %v305 = vpack.c.b16 %v265, %v255
    %v306 = vpack.c.b16 %v266, %v256
    %vm347 = vcmask 523264
    %v349 = vsel %vm347, %v42, 0
    %351 = vmatprep.subr.bf16.mxu0 0
    %352 = vmatpush1.bf16.msra.mxu0 0
    %353 = vmatprep.subr.bf16.mxu0 0
    %354 = vmatpush1.bf16.msra.mxu0 0
    %355 = vmatprep.subr.bf16.mxu0 0
    %356 = vmatpush1.bf16.msra.mxu0 0
    %357 = vmatprep.subr.bf16.mxu0 0
    %358 = vmatpush1.bf16.msra.mxu0 0
    %359 = vmatprep.subr.bf16.mxu0 %v298
    %360 = vmatpush1.bf16.msra.mxu0 %v297
    %361 = vmatprep.subr.bf16.mxu0 %v288
    %362 = vmatpush1.bf16.msra.mxu0 %v287
    %363 = vmatprep.subr.bf16.mxu0 %v278
    %364 = vmatpush1.bf16.msra.mxu0 %v277
    %365 = vmatprep.subr.bf16.mxu0 %v268
    %366 = vmatpush1.bf16.msra.mxu0 %v267
    %367 = vmatprep.subr.bf16.mxu0 0
    %368 = vmatpush2.bf16.msra.mxu0 0
    %369 = vmatprep.subr.bf16.mxu0 0
    %370 = vmatpush2.bf16.msra.mxu0 0
    %371 = vmatprep.subr.bf16.mxu0 0
    %372 = vmatpush2.bf16.msra.mxu0 0
    %373 = vmatprep.subr.bf16.mxu0 0
    %374 = vmatpush2.bf16.msra.mxu0 0
    %375 = vmatprep.subr.bf16.mxu0 0
    %376 = vmatpush2.bf16.msra.mxu0 0
    %377 = vmatprep.subr.bf16.mxu0 0
    %378 = vmatpush2.bf16.msra.mxu0 0
    %379 = vmatprep.subr.bf16.mxu0 0
    %380 = vmatpush2.bf16.msra.mxu0 0
    %381 = vmatprep.subr.bf16.mxu0 0
    %382 = vmatpush2.bf16.msra.mxu0 0
    %383 = vmatprep.mubr.bf16.mxu0 0
    %384 = vmatmul.mubr.bf16.gmra.mxu0 %v349
    %v385 = vpop.f32.mrf.mxu0
    %v386 = vadd.f32 %v100, %v385
    %v387 = vpop.f32.mrf.mxu0
    %v388 = vadd.f32 %v104, %v387
    %v389 = vpop.f32.mrf.mxu0
    %v390 = vpop.f32.mrf.mxu0
    %391 = vdwg.mxu0
    %392 = vmatprep.subr.bf16.mxu0 0
    %393 = vmatpush1.bf16.msra.mxu0 0
    %394 = vmatprep.subr.bf16.mxu0 0
    %395 = vmatpush1.bf16.msra.mxu0 0
    %396 = vmatprep.subr.bf16.mxu0 0
    %397 = vmatpush1.bf16.msra.mxu0 0
    %398 = vmatprep.subr.bf16.mxu0 0
    %399 = vmatpush1.bf16.msra.mxu0 0
    %400 = vmatprep.subr.bf16.mxu0 %v300
    %401 = vmatpush1.bf16.msra.mxu0 %v299
    %402 = vmatprep.subr.bf16.mxu0 %v290
    %403 = vmatpush1.bf16.msra.mxu0 %v289
    %404 = vmatprep.subr.bf16.mxu0 %v280
    %405 = vmatpush1.bf16.msra.mxu0 %v279
    %406 = vmatprep.subr.bf16.mxu0 %v270
    %407 = vmatpush1.bf16.msra.mxu0 %v269
    %408 = vmatprep.subr.bf16.mxu0 0
    %409 = vmatpush2.bf16.msra.mxu0 0
    %410 = vmatprep.subr.bf16.mxu0 0
    %411 = vmatpush2.bf16.msra.mxu0 0
    %412 = vmatprep.subr.bf16.mxu0 0
    %413 = vmatpush2.bf16.msra.mxu0 0
    %414 = vmatprep.subr.bf16.mxu0 0
    %415 = vmatpush2.bf16.msra.mxu0 0
    %416 = vmatprep.subr.bf16.mxu0 0
    %417 = vmatpush2.bf16.msra.mxu0 0
    %418 = vmatprep.subr.bf16.mxu0 0
    %419 = vmatpush2.bf16.msra.mxu0 0
    %420 = vmatprep.subr.bf16.mxu0 0
    %421 = vmatpush2.bf16.msra.mxu0 0
    %422 = vmatprep.subr.bf16.mxu0 0
    %423 = vmatpush2.bf16.msra.mxu0 0
    %424 = vmatprep.mubr.bf16.mxu0 0
    %425 = vmatmul.mubr.bf16.gmra.mxu0 %v349
    %v426 = vpop.f32.mrf.mxu0
    %v427 = vadd.f32 %v108, %v426
    %v428 = vpop.f32.mrf.mxu0
    %v429 = vadd.f32 %v112, %v428
    %v430 = vpop.f32.mrf.mxu0
    %v431 = vpop.f32.mrf.mxu0
    %432 = vdwg.mxu0
    %433 = vmatprep.subr.bf16.mxu0 0
    %434 = vmatpush1.bf16.msra.mxu0 0
    %435 = vmatprep.subr.bf16.mxu0 0
    %436 = vmatpush1.bf16.msra.mxu0 0
    %437 = vmatprep.subr.bf16.mxu0 0
    %438 = vmatpush1.bf16.msra.mxu0 0
    %439 = vmatprep.subr.bf16.mxu0 0
    %440 = vmatpush1.bf16.msra.mxu0 0
    %441 = vmatprep.subr.bf16.mxu0 %v302
    %442 = vmatpush1.bf16.msra.mxu0 %v301
    %443 = vmatprep.subr.bf16.mxu0 %v292
    %444 = vmatpush1.bf16.msra.mxu0 %v291
    %445 = vmatprep.subr.bf16.mxu0 %v282
    %446 = vmatpush1.bf16.msra.mxu0 %v281
    %447 = vmatprep.subr.bf16.mxu0 %v272
    %448 = vmatpush1.bf16.msra.mxu0 %v271
    %449 = vmatprep.subr.bf16.mxu0 0
    %450 = vmatpush2.bf16.msra.mxu0 0
    %451 = vmatprep.subr.bf16.mxu0 0
    %452 = vmatpush2.bf16.msra.mxu0 0
    %453 = vmatprep.subr.bf16.mxu0 0
    %454 = vmatpush2.bf16.msra.mxu0 0
    %455 = vmatprep.subr.bf16.mxu0 0
    %456 = vmatpush2.bf16.msra.mxu0 0
    %457 = vmatprep.subr.bf16.mxu0 0
    %458 = vmatpush2.bf16.msra.mxu0 0
    %459 = vmatprep.subr.bf16.mxu0 0
    %460 = vmatpush2.bf16.msra.mxu0 0
    %461 = vmatprep.subr.bf16.mxu0 0
    %462 = vmatpush2.bf16.msra.mxu0 0
    %463 = vmatprep.subr.bf16.mxu0 0
    %464 = vmatpush2.bf16.msra.mxu0 0
    %465 = vmatprep.mubr.bf16.mxu0 0
    %466 = vmatmul.mubr.bf16.gmra.mxu0 %v349
    %v467 = vpop.f32.mrf.mxu0
    %v468 = vadd.f32 %v116, %v467
    %v469 = vpop.f32.mrf.mxu0
    %v470 = vadd.f32 %v120, %v469
    %v471 = vpop.f32.mrf.mxu0
    %v472 = vpop.f32.mrf.mxu0
    %473 = vdwg.mxu0
    %474 = vmatprep.subr.bf16.mxu0 0
    %475 = vmatpush1.bf16.msra.mxu0 0
    %476 = vmatprep.subr.bf16.mxu0 0
    %477 = vmatpush1.bf16.msra.mxu0 0
    %478 = vmatprep.subr.bf16.mxu0 0
    %479 = vmatpush1.bf16.msra.mxu0 0
    %480 = vmatprep.subr.bf16.mxu0 0
    %481 = vmatpush1.bf16.msra.mxu0 0
    %482 = vmatprep.subr.bf16.mxu0 %v304
    %483 = vmatpush1.bf16.msra.mxu0 %v303
    %484 = vmatprep.subr.bf16.mxu0 %v294
    %485 = vmatpush1.bf16.msra.mxu0 %v293
    %486 = vmatprep.subr.bf16.mxu0 %v284
    %487 = vmatpush1.bf16.msra.mxu0 %v283
    %488 = vmatprep.subr.bf16.mxu0 %v274
    %489 = vmatpush1.bf16.msra.mxu0 %v273
    %490 = vmatprep.subr.bf16.mxu0 0
    %491 = vmatpush2.bf16.msra.mxu0 0
    %492 = vmatprep.subr.bf16.mxu0 0
    %493 = vmatpush2.bf16.msra.mxu0 0
    %494 = vmatprep.subr.bf16.mxu0 0
    %495 = vmatpush2.bf16.msra.mxu0 0
    %496 = vmatprep.subr.bf16.mxu0 0
    %497 = vmatpush2.bf16.msra.mxu0 0
    %498 = vmatprep.subr.bf16.mxu0 0
    %499 = vmatpush2.bf16.msra.mxu0 0
    %500 = vmatprep.subr.bf16.mxu0 0
    %501 = vmatpush2.bf16.msra.mxu0 0
    %502 = vmatprep.subr.bf16.mxu0 0
    %503 = vmatpush2.bf16.msra.mxu0 0
    %504 = vmatprep.subr.bf16.mxu0 0
    %505 = vmatpush2.bf16.msra.mxu0 0
    %506 = vmatprep.mubr.bf16.mxu0 0
    %507 = vmatmul.mubr.bf16.gmra.mxu0 %v349
    %v508 = vpop.f32.mrf.mxu0
    %v509 = vadd.f32 %v124, %v508
    %v510 = vpop.f32.mrf.mxu0
    %v511 = vadd.f32 %v128, %v510
    %v512 = vpop.f32.mrf.mxu0
    %v513 = vpop.f32.mrf.mxu0
    %514 = vdwg.mxu0
    %515 = vmatprep.subr.bf16.mxu0 0
    %516 = vmatpush1.bf16.msra.mxu0 0
    %517 = vmatprep.subr.bf16.mxu0 0
    %518 = vmatpush1.bf16.msra.mxu0 0
    %519 = vmatprep.subr.bf16.mxu0 0
    %520 = vmatpush1.bf16.msra.mxu0 0
    %521 = vmatprep.subr.bf16.mxu0 0
    %522 = vmatpush1.bf16.msra.mxu0 0
    %523 = vmatprep.subr.bf16.mxu0 %v306
    %524 = vmatpush1.bf16.msra.mxu0 %v305
    %525 = vmatprep.subr.bf16.mxu0 %v296
    %526 = vmatpush1.bf16.msra.mxu0 %v295
    %527 = vmatprep.subr.bf16.mxu0 %v286
    %528 = vmatpush1.bf16.msra.mxu0 %v285
    %529 = vmatprep.subr.bf16.mxu0 %v276
    %530 = vmatpush1.bf16.msra.mxu0 %v275
    %531 = vmatprep.subr.bf16.mxu0 0
    %532 = vmatpush2.bf16.msra.mxu0 0
    %533 = vmatprep.subr.bf16.mxu0 0
    %534 = vmatpush2.bf16.msra.mxu0 0
    %535 = vmatprep.subr.bf16.mxu0 0
    %536 = vmatpush2.bf16.msra.mxu0 0
    %537 = vmatprep.subr.bf16.mxu0 0
    %538 = vmatpush2.bf16.msra.mxu0 0
    %539 = vmatprep.subr.bf16.mxu0 0
    %540 = vmatpush2.bf16.msra.mxu0 0
    %541 = vmatprep.subr.bf16.mxu0 0
    %542 = vmatpush2.bf16.msra.mxu0 0
    %543 = vmatprep.subr.bf16.mxu0 0
    %544 = vmatpush2.bf16.msra.mxu0 0
    %545 = vmatprep.subr.bf16.mxu0 0
    %546 = vmatpush2.bf16.msra.mxu0 0
    %547 = vmatprep.mubr.bf16.mxu0 0
    %548 = vmatmul.mubr.bf16.gmra.mxu0 %v349
    %v549 = vpop.f32.mrf.mxu0
    %v550 = vadd.f32 %v132, %v549
    %v551 = vpop.f32.mrf.mxu0
    %v552 = vadd.f32 %v136, %v551
    %v553 = vpop.f32.mrf.mxu0
    %v554 = vpop.f32.mrf.mxu0
    %555 = vdwg.mxu0
    %v566 = vcombine.low %v386, %v388
    %v567 = vcombine.low %v427, %v429
    %v568 = vcombine.low %v468, %v470
    %v569 = vcombine.low %v509, %v511
    %v570 = vcombine.low %v550, %v552
    %576 = vst [vmem:[%s6] sm:$0xff] %v566
    %577 = vst [vmem:[%s6 + $0x8] sm:$0xff] %v567
    %578 = vst [vmem:[%s6 + $0x10] sm:$0xff] %v568
    %579 = vst [vmem:[%s6 + $0x18] sm:$0xff] %v569
    %580 = vst [vmem:[%s6 + $0x20] sm:$0xff] %v570
    %v581 = vld [vmem:[%s5] sm:$0x1]
    %v583 = vlaneseq
    %v584 = vshrl.u32 %v583, 7
    %v585 = vsub.s32 0, %v584
    %v586 = vrot.slane %v581, %v585
    %v596 = vunpack.c.l.b16 %v85
    %v597 = vunpack.c.l.b16 %v86
    %v598 = vunpack.c.l.b16 %v87
    %v599 = vunpack.c.l.b16 %v88
    %v600 = vunpack.c.l.b16 %v89
    %v601 = vunpack.c.l.b16 %v90
    %v602 = vunpack.c.l.b16 %v91
    %v603 = vunpack.c.l.b16 %v92
    %v604 = vpack.c.b16 %v597, %v596
    %v605 = vpack.c.b16 %v599, %v598
    %v606 = vpack.c.b16 %v601, %v600
    %v607 = vpack.c.b16 %v603, %v602
    %v613 = vsel %vm347, %v44, 0
    %615 = vmatprep.subr.bf16.mxu0 0
    %616 = vmatpush1.bf16.msra.mxu0 0
    %617 = vmatprep.subr.bf16.mxu0 0
    %618 = vmatpush1.bf16.msra.mxu0 0
    %619 = vmatprep.subr.bf16.mxu0 0
    %620 = vmatpush1.bf16.msra.mxu0 0
    %621 = vmatprep.subr.bf16.mxu0 0
    %622 = vmatpush1.bf16.msra.mxu0 0
    %623 = vmatprep.subr.bf16.mxu0 0
    %624 = vmatpush1.bf16.msra.mxu0 %v607
    %625 = vmatprep.subr.bf16.mxu0 0
    %626 = vmatpush1.bf16.msra.mxu0 %v606
    %627 = vmatprep.subr.bf16.mxu0 0
    %628 = vmatpush1.bf16.msra.mxu0 %v605
    %629 = vmatprep.subr.bf16.mxu0 0
    %630 = vmatpush1.bf16.msra.mxu0 %v604
    %631 = vmatprep.subr.bf16.mxu0 0
    %632 = vmatpush2.bf16.msra.mxu0 0
    %633 = vmatprep.subr.bf16.mxu0 0
    %634 = vmatpush2.bf16.msra.mxu0 0
    %635 = vmatprep.subr.bf16.mxu0 0
    %636 = vmatpush2.bf16.msra.mxu0 0
    %637 = vmatprep.subr.bf16.mxu0 0
    %638 = vmatpush2.bf16.msra.mxu0 0
    %639 = vmatprep.subr.bf16.mxu0 0
    %640 = vmatpush2.bf16.msra.mxu0 0
    %641 = vmatprep.subr.bf16.mxu0 0
    %642 = vmatpush2.bf16.msra.mxu0 0
    %643 = vmatprep.subr.bf16.mxu0 0
    %644 = vmatpush2.bf16.msra.mxu0 0
    %645 = vmatprep.subr.bf16.mxu0 0
    %646 = vmatpush2.bf16.msra.mxu0 0
    %647 = vmatprep.mubr.bf16.mxu0 0
    %648 = vmatmul.mubr.bf16.gmra.mxu0 %v613
    %v649 = vpop.f32.mrf.mxu0
    %v650 = vadd.f32 %v586, %v649
    %v651 = vpop.f32.mrf.mxu0
    %v652 = vpop.f32.mrf.mxu0
    %v653 = vpop.f32.mrf.mxu0
    %654 = vdwg.mxu0
    %655 = vst [vmem:[#allocation5] sm:$0xff] %v650
    // Predicated region
    $region30: #{contrastive_learning_forward.1} parent=1 // pred_check
      _
    $region31: #{contrastive_learning_forward.1} parent=1 // pred_check_branch
      %657 = sbr.rel (0) target = $region33
    $region32: #{contrastive_learning_forward.1} parent=1 // pred_region
      _
    $region33: #{contrastive_learning_forward.1} parent=1 // pred_fallthru
      _
    // Predicated region
    $region34: #{contrastive_learning_forward.1} parent=1 // pred_check
      _
    $region35: #{contrastive_learning_forward.1} parent=1 // pred_check_branch
      %659 = sbr.rel (0) target = $region37
    $region36: #{contrastive_learning_forward.1} parent=1 // pred_region
      %s661 = ssub.s32 128, 128
      %662 = vsyncadd [#allocation4], %s661
      %s664 = sshll.u32 [#allocation5], 4
      %s665 = int_to_ptr.vmem [resolvable:$true] %s664
      %667 = dma.vmem_to_hbm [thread:$0]  %s665, 128, %s7, [#allocation4]
    $region37: #{contrastive_learning_forward.1} parent=1 // pred_fallthru
      _
    // Predicated region
    $region38: #{contrastive_learning_forward.1} parent=1 // pred_check
      _
    $region39: #{contrastive_learning_forward.1} parent=1 // pred_check_branch
      %669 = sbr.rel (0) target = $region41
    $region40: #{contrastive_learning_forward.1} parent=1 // pred_region
      _
    $region41: #{contrastive_learning_forward.1} parent=1 // pred_fallthru
      _
    // Predicated region
    $region42: #{contrastive_learning_forward.1} parent=1 // pred_check
      _
    $region43: #{contrastive_learning_forward.1} parent=1 // pred_check_branch
      %671 = sbr.rel (0) target = $region45
    $region44: #{contrastive_learning_forward.1} parent=1 // pred_region
      %672 = dma.done [#allocation4], 128
    $region45: #{contrastive_learning_forward.1} parent=1 // pred_fallthru
      _
    %673 = vsyncpa [#allocation3], 1
    %674 = vsyncpa [#allocation4], 1

</llo_original>
